<compile_context>
chip_gen: v7x
topology: tpu7x:2x2x1
jax: 0.10.0
libtpu: 0.0.40
codegen_flags: <defaults>
</compile_context>

<pallas_src>
import functools
from typing import NamedTuple

import jax
import jax.numpy as jnp
from jax.experimental import pallas as pl
from jax.experimental.pallas import tpu as pltpu


# ---------------------------------------------------------------------------
# Helpers
# ---------------------------------------------------------------------------

_FAST_M, _FAST_K, _FAST_N = 256, 512, 512   # single-block fast-path caps


def _round_up(x, m):
    return ((x + m - 1) // m) * m


def _apply_activation(y, acti_fn):
    if acti_fn == 'none':
        return y
    if acti_fn == 'relu':
        return jnp.maximum(y, 0.0)
    if acti_fn == 'lrelu':
        # torch.nn.LeakyReLU default negative_slope = 0.01
        return jnp.where(y >= 0.0, y, 0.01 * y)
    if acti_fn == 'sigmoid':
        return jax.nn.sigmoid(y)      # EUP slot, effectively free under MXU
    if acti_fn == 'tanh':
        return jnp.tanh(y)
    raise Exception('Unsupported activation function: ' + str(acti_fn))


def _vmem_limit_bytes():
    """Per-generation scoped-VMEM limit: 3/4 of physical per-core VMEM,
    capped at 64 MiB (v7x: 64 MiB/core -> 48 MiB; v5e/v6e: 128 MiB -> 64 MiB)."""
    cap = 64 * 1024 * 1024
    try:
        info = pltpu.get_tpu_info()
        c = getattr(info, "vmem_capacity_bytes", None)
        if c:
            cap = int(c)
    except Exception:
        pass
    return int(min(cap * 3 // 4, 64 * 1024 * 1024))


# ---------------------------------------------------------------------------
# One-time parameter preparation (do at init, NOT per forward)
# ---------------------------------------------------------------------------

class LinearBlockParams(NamedTuple):
    w_t: jax.Array    # (K_p, N_p) = weight transposed to (n_in, n_out), maybe padded
    b: jax.Array      # (1, N_p) float32 bias, padded to match w_t
    n_in: int
    n_out: int


def prepare_linear_block_params(weight, bias, *, compute_dtype=None):
    """weight: (n_out, n_in) torch layout; bias: (n_out,).
    Transposes (so the kernel feeds the MXU in its native layout), optionally
    casts to a bf16 compute dtype, and pre-pads to 128-multiples when the
    layer is large enough that the tiled path will be used."""
    n_out, n_in = weight.shape
    assert bias.shape == (n_out,)
    w_t = weight.T                                      # (n_in, n_out)
    if compute_dtype is not None:
        w_t = w_t.astype(compute_dtype)
    b = bias.astype(jnp.float32).reshape(1, n_out)
    if n_in > _FAST_K or n_out > _FAST_N:
        k_p = _round_up(n_in, 128)
        n_p = _round_up(n_out, 128)
        if (k_p, n_p) != (n_in, n_out):
            w_t = jnp.pad(w_t, ((0, k_p - n_in), (0, n_p - n_out)))
            b = jnp.pad(b, ((0, 0), (0, n_p - n_out)))
    return LinearBlockParams(w_t=w_t, b=b, n_in=n_in, n_out=n_out)


# ---------------------------------------------------------------------------
# Kernels
# ---------------------------------------------------------------------------

def _single_block_kernel(x_ref, w_ref, b_ref, o_ref, *, acti_fn):
    y = jnp.dot(x_ref[...], w_ref[...], preferred_element_type=jnp.float32)
    y = y + b_ref[...]
    o_ref[...] = _apply_activation(y, acti_fn).astype(o_ref.dtype)


def _tiled_kernel_f32out(x_ref, w_ref, b_ref, o_ref, *, acti_fn):
    # f32 output: accumulate directly into the resident output tile (no scratch).
    k = pl.program_id(2)

    @pl.when(k == 0)
    def _():
        o_ref[...] = jnp.zeros_like(o_ref)

    o_ref[...] += jnp.dot(x_ref[...], w_ref[...],
                          preferred_element_type=jnp.float32)

    @pl.when(k == pl.num_programs(2) - 1)
    def _():
        o_ref[...] = _apply_activation(o_ref[...] + b_ref[...], acti_fn)


def _tiled_kernel_acc(x_ref, w_ref, b_ref, o_ref, acc_ref, *, acti_fn):
    # Narrow output dtype: f32 VMEM accumulator, single cast in the epilogue.
    k = pl.program_id(2)

    @pl.when(k == 0)
    def _():
        acc_ref[...] = jnp.zeros_like(acc_ref)

    acc_ref[...] += jnp.dot(x_ref[...], w_ref[...],
                            preferred_element_type=jnp.float32)

    @pl.when(k == pl.num_programs(2) - 1)
    def _():
        y = _apply_activation(acc_ref[...] + b_ref[...], acti_fn)
        o_ref[...] = y.astype(o_ref.dtype)


# ---------------------------------------------------------------------------
# Forward wrapper
# ---------------------------------------------------------------------------

def linear_block(x, params, *, acti_fn='none'):
    """Pallas LinearBlock forward (norm_fn='none' path).

    x:      (B, n_in)  float32 or bfloat16
    params: LinearBlockParams from prepare_linear_block_params
    Returns (B, n_out) in x's original dtype.
    """
    B, n_in = x.shape
    assert n_in == params.n_in, "x last dim must equal n_in"
    out_dtype = x.dtype
    w, b = params.w_t, params.b
    if x.dtype != w.dtype:
        x = x.astype(w.dtype)     # opt-in bf16 compute path; accumulation stays f32

    k_w, n_w = w.shape

    # ---- Fast path: one block, no padding, no slicing, no grid machinery. ----
    if (B <= _FAST_M and params.n_in <= _FAST_K and params.n_out <= _FAST_N
            and (k_w, n_w) == (params.n_in, params.n_out)):
        return pl.pallas_call(
            functools.partial(_single_block_kernel, acti_fn=acti_fn),
            out_shape=jax.ShapeDtypeStruct((B, params.n_out), out_dtype),
        )(x, w, b)

    # ---- Tiled path: 3-D (M, N, K) grid, K innermost (resident reduction). ----
    m_align = 16 if w.dtype == jnp.bfloat16 else 8

    # Weight/bias were padded once at prepare time; handle the rare case of a
    # small un-padded weight reaching this path (very large B).
    K_p = _round_up(k_w, 128)
    N_p = _round_up(n_w, 128)
    if (K_p, N_p) != (k_w, n_w):
        w = jnp.pad(w, ((0, K_p - k_w), (0, N_p - n_w)))
        b = jnp.pad(b, ((0, 0), (0, N_p - n_w)))

    def _pick(cands, dim):
        for c in cands:
            if c <= dim and dim % c == 0:
                return c
        return dim

    tk = _pick((512, 256, 128), K_p)
    tn = _pick((512, 256, 128), N_p)
    tm = min(512, _round_up(B, m_align))

    # v7x has 2 TensorCores sharding "parallel" grid axes: make sure at least
    # one parallel axis has >= 2 tiles when the grid would collapse to (1,1,K).
    if _round_up(B, tm) // tm == 1 and N_p // tn == 1:
        if tn > 128:
            tn //= 2
        elif tm >= 2 * m_align:
            tm = _round_up(tm // 2, m_align)

    M_p = _round_up(B, tm)

    # x is the only array (possibly) padded per call; zero K-padding is exact
    # for the matmul and padded M rows are sliced off below.
    if (M_p, K_p) != (B, n_in):
        x = jnp.pad(x, ((0, M_p - B), (0, K_p - n_in)))

    grid = (M_p // tm, N_p // tn, K_p // tk)

    f32_out = out_dtype == jnp.float32
    kernel = functools.partial(
        _tiled_kernel_f32out if f32_out else _tiled_kernel_acc, acti_fn=acti_fn)
    scratch = [] if f32_out else [pltpu.VMEM((tm, tn), jnp.float32)]

    itemsize = jnp.dtype(w.dtype).itemsize
    cost = pl.CostEstimate(
        flops=2 * B * n_in * params.n_out,
        transcendentals=(B * params.n_out) if acti_fn in ('sigmoid', 'tanh') else 0,
        bytes_accessed=itemsize * (M_p * K_p + K_p * N_p + M_p * N_p) + 4 * N_p,
    )

    out_p = pl.pallas_call(
        kernel,
        out_shape=jax.ShapeDtypeStruct((M_p, N_p), out_dtype),
        grid_spec=pltpu.PrefetchScalarGridSpec(
            num_scalar_prefetch=0,
            grid=grid,
            in_specs=[
                pl.BlockSpec((tm, tk), lambda i, j, k: (i, k)),   # x tile
                pl.BlockSpec((tk, tn), lambda i, j, k: (k, j)),   # weight (n_in, n_out)
                pl.BlockSpec((1, tn), lambda i, j, k: (0, j)),    # bias
            ],
            out_specs=pl.BlockSpec((tm, tn), lambda i, j, k: (i, j)),
            scratch_shapes=scratch,
        ),
        compiler_params=pltpu.CompilerParams(
            dimension_semantics=("parallel", "parallel", "arbitrary"),
            vmem_limit_bytes=_vmem_limit_bytes()),
        cost_estimate=cost,
    )(x, w, b)

    if (M_p, N_p) == (B, params.n_out):
        return out_p
    return out_p[:B, :params.n_out]


# ---------------------------------------------------------------------------
# Reference + tests
# ---------------------------------------------------------------------------

def _reference(x, weight, bias, acti_fn='none'):
    y = jnp.dot(x.astype(jnp.float32), weight.T.astype(jnp.float32),
                precision=jax.lax.Precision.HIGHEST) + bias.astype(jnp.float32)
    if acti_fn == 'relu':
        y = jnp.maximum(y, 0.0)
    elif acti_fn == 'lrelu':
        y = jnp.where(y >= 0.0, y, 0.01 * y)
    elif acti_fn == 'sigmoid':
        y = jax.nn.sigmoid(y)
    elif acti_fn == 'tanh':
        y = jnp.tanh(y)
    return y


if __name__ == "__main__":
    key = jax.random.PRNGKey(0)

    # Case 1: module-typical tiny shapes -> single-block fast path (no padding).
    B, n_in, n_out = 8, 32, 32
    k1, k2, k3, key = jax.random.split(key, 4)
    bound = 1.0 / (n_in ** 0.5)
    x = jax.random.normal(k1, (B, n_in), dtype=jnp.float32)
    w = jax.random.uniform(k2, (n_out, n_in), jnp.float32, -bound, bound)
    b = jax.random.uniform(k3, (n_out,), jnp.float32, -bound, bound)
    params = prepare_linear_block_params(w, b)

    out = jax.block_until_ready(linear_block(x, params, acti_fn='none'))
    assert out.shape == (B, n_out) and out.dtype == jnp.float32
    assert jnp.allclose(out, _reference(x, w, b, 'none'), atol=1e-5, rtol=1e-5)

    out_relu = jax.block_until_ready(linear_block(x, params, acti_fn='relu'))
    assert jnp.allclose(out_relu, _reference(x, w, b, 'relu'),
                        atol=1e-5, rtol=1e-5)

    # Case 1b: opt-in bf16 compute path (f32 accumulation, f32 epilogue).
    params_bf16 = prepare_linear_block_params(w, b, compute_dtype=jnp.bfloat16)
    out_bf = jax.block_until_ready(
        linear_block(x.astype(jnp.bfloat16), params_bf16, acti_fn='sigmoid'))
    assert out_bf.shape == (B, n_out) and out_bf.dtype == jnp.bfloat16
    assert jnp.allclose(out_bf.astype(jnp.float32),
                        _reference(x, w, b, 'sigmoid'), atol=3e-2, rtol=3e-2)

    # Case 2: tiled path (n_in > 512 forces the 3-D grid), K reduction + tanh
    # epilogue, no per-call padding needed (dims already 8/128-aligned).
    B2, n_in2, n_out2 = 24, 640, 384
    k1, k2, k3, key = jax.random.split(key, 4)
    bound2 = 1.0 / (n_in2 ** 0.5)
    x2 = jax.random.normal(k1, (B2, n_in2), dtype=jnp.float32)
    w2 = jax.random.uniform(k2, (n_out2, n_in2), jnp.float32, -bound2, bound2)
    b2 = jax.random.uniform(k3, (n_out2,), jnp.float32, -bound2, bound2)
    params2 = prepare_linear_block_params(w2, b2)

    out2 = jax.block_until_ready(linear_block(x2, params2, acti_fn='tanh'))
    assert out2.shape == (B2, n_out2)
    assert jnp.allclose(out2, _reference(x2, w2, b2, 'tanh'),
                        atol=2e-3, rtol=2e-3)

    print("KERNEL_OK")
</pallas_src>

<mosaic_0001>
module attributes {stable_mosaic.version = 11 : i64} {
  func.func @_single_block_kernel(%arg0: memref<8x32xf32, #tpu.memory_space<vmem>>, %arg1: memref<32x32xf32, #tpu.memory_space<vmem>>, %arg2: memref<1x32xf32, #tpu.memory_space<vmem>>, %arg3: memref<8x32xf32, #tpu.memory_space<vmem>>) attributes {dimension_semantics = [], scalar_prefetch = 0 : i64, scratch_operands = 0 : i64, tpu.core_type = #tpu.core_type<tc>} {
    %c0 = arith.constant 0 : index
    %c0_0 = arith.constant 0 : index
    %0 = vector.load %arg0[%c0, %c0_0] : memref<8x32xf32, #tpu.memory_space<vmem>>, vector<8x32xf32>
    %c0_1 = arith.constant 0 : index
    %c0_2 = arith.constant 0 : index
    %1 = vector.load %arg1[%c0_1, %c0_2] : memref<32x32xf32, #tpu.memory_space<vmem>>, vector<32x32xf32>
    %cst = arith.constant dense<0.000000e+00> : vector<8x32xf32>
    %2 = tpu.matmul %0, %1, %cst {dimension_numbers = #tpu.dot_dimension_numbers<[1], [0], [0], [1], [0, 0, 1, 1], [], []>} : vector<8x32xf32>, vector<32x32xf32>, vector<8x32xf32> -> vector<8x32xf32>
    %c0_3 = arith.constant 0 : index
    %c0_4 = arith.constant 0 : index
    %3 = vector.load %arg2[%c0_3, %c0_4] : memref<1x32xf32, #tpu.memory_space<vmem>>, vector<1x32xf32>
    %4 = vector.broadcast %3 : vector<1x32xf32> to vector<8x32xf32>
    %5 = arith.addf %2, %4 : vector<8x32xf32>
    %c0_5 = arith.constant 0 : index
    %c0_6 = arith.constant 0 : index
    %6 = vector.load %arg3[%c0_5, %c0_6] : memref<8x32xf32, #tpu.memory_space<vmem>>, vector<8x32xf32>
    tpu.vector_store %arg3[%c0_5, %c0_6], %5 {strides = array<i32>} : memref<8x32xf32, #tpu.memory_space<vmem>>, vector<8x32xf32>,
    return
  }
}

</mosaic_0001>

<llo_original>
// kernel: tpu_custom_call.1
$region0: #{tpu_custom_call.1}
  #allocation0 [shape = 'u32[]', space=smem, size = 0x4, offset = 0x4, fixed_abs, tag = 'smem constant byte address 0x4 - core index']
  #allocation1 [shape = 'u32[144,128]{1,0:T(1,128)}', space=vmem, size = 0x12000, scoped, tag = 'internal scratch']
  %s0 = inlined_call_operand.hbm [shape: f32[8,32], index: 0, kind: input, shape index: {}]
  %s1 = inlined_call_operand.hbm [shape: f32[32,32], index: 1, kind: input, shape index: {}]
  %s2 = inlined_call_operand.vmem [shape: f32[1,32], index: 2, kind: input, shape index: {}]
  %s3 = inlined_call_operand.hbm [shape: f32[8,32], index: 3, kind: output, shape index: {}]
  %s4 = sld [smem:[#allocation0]]
  $region30: #{tpu_custom_call.1} parent=0
    _
  %s6 = ssub.s32 1, %s4
  %s7 = scalar_select 0, %s6, %s4
  $region1: #{tpu_custom_call.1} parent=0
    #allocation2 [shape = 'u8[4096]{0}', space=vmem, size = 0x1000, scoped, tag = 'input window, operand 0, single buffered']
    #allocation3 [shape = 's32[1]{0}', space=sflag, size = 0x4, scoped, tag = 'scoped memory for tpu_custom_call.1']
    #allocation4 [shape = 's32[1]{0}', space=sflag, size = 0x4, scoped, tag = 'scoped memory for tpu_custom_call.1']
    #allocation5 [shape = 'u8[16384]{0}', space=vmem, size = 0x4000, scoped, tag = 'input window, operand 1, single buffered']
    #allocation6 [shape = 's32[1]{0}', space=sflag, size = 0x4, scoped, tag = 'scoped memory for tpu_custom_call.1']
    #allocation7 [shape = 'u8[4096]{0}', space=vmem, size = 0x1000, scoped, tag = 'output window, operand 0, single buffered']
    %8 = vsyncpa [#allocation3], 0
    %9 = vsyncpa [#allocation6], 0
    %10 = vsyncpa [#allocation4], 0
    // Predicated region
    $region2: #{tpu_custom_call.1} parent=1 // pred_check
      _
    $region3: #{tpu_custom_call.1} parent=1 // pred_check_branch
      %12 = sbr.rel (0) target = $region5
    $region4: #{tpu_custom_call.1} parent=1 // pred_region
      %s14 = ssub.s32 128, 128
      %15 = vsyncadd [#allocation3], %s14
      %s17 = sshll.u32 [#allocation2], 4
      %s18 = int_to_ptr.vmem [resolvable:$true] %s17
      %20 = dma.hbm_to_vmem [thread:$0]  %s0, 128, %s18, [#allocation3]
    $region5: #{tpu_custom_call.1} parent=1 // pred_fallthru
      _
    // Predicated region
    $region6: #{tpu_custom_call.1} parent=1 // pred_check
      _
    $region7: #{tpu_custom_call.1} parent=1 // pred_check_branch
      %22 = sbr.rel (0) target = $region9
    $region8: #{tpu_custom_call.1} parent=1 // pred_region
      %s24 = ssub.s32 512, 512
      %25 = vsyncadd [#allocation6], %s24
      %s26 = sshll.u32 [#allocation5], 4
      %s27 = int_to_ptr.vmem [resolvable:$true] %s26
      %32 = dma.hbm_to_vmem [thread:$0]  %s1, 512, %s27, [#allocation6], 128, 128, 8
    $region9: #{tpu_custom_call.1} parent=1 // pred_fallthru
      _
    // Predicated region
    $region10: #{tpu_custom_call.1} parent=1 // pred_check
      _
    $region11: #{tpu_custom_call.1} parent=1 // pred_check_branch
      %34 = sbr.rel (0) target = $region13
    $region12: #{tpu_custom_call.1} parent=1 // pred_region
      _
    $region13: #{tpu_custom_call.1} parent=1 // pred_fallthru
      _
    // Predicated region
    $region14: #{tpu_custom_call.1} parent=1 // pred_check
      _
    $region15: #{tpu_custom_call.1} parent=1 // pred_check_branch
      %36 = sbr.rel (0) target = $region17
    $region16: #{tpu_custom_call.1} parent=1 // pred_region
      %37 = dma.done [#allocation3], 128
    $region17: #{tpu_custom_call.1} parent=1 // pred_fallthru
      _
    // Predicated region
    $region18: #{tpu_custom_call.1} parent=1 // pred_check
      _
    $region19: #{tpu_custom_call.1} parent=1 // pred_check_branch
      %39 = sbr.rel (0) target = $region21
    $region20: #{tpu_custom_call.1} parent=1 // pred_region
      %40 = dma.done [#allocation6], 512
    $region21: #{tpu_custom_call.1} parent=1 // pred_fallthru
      _
    %v41 = vld [vmem:[#allocation2] sm:$0xff]
    %v42 = vld [vmem:[#allocation5] sm:$0xff]
    %v43 = vld [vmem:[#allocation5 + $0x8] sm:$0xff]
    %v44 = vld [vmem:[#allocation5 + $0x10] sm:$0xff]
    %v45 = vld [vmem:[#allocation5 + $0x18] sm:$0xff]
    %v46 = vld [vmem:[%s2] sm:$0x1]
    %v48 = vlaneseq
    %v49 = vshrl.u32 %v48, 7
    %v50 = vsub.s32 0, %v49
    %v51 = vrot.slane %v46, %v50
    %vm53 = vcmask 261120
    %v55 = vsel %vm53, %v41, 0
    %57 = vmatprep.subr.mxu0 0.0
    %58 = vmatpush1.msra.mxu0 %v42
    %59 = vmatprep.subr.mxu0 0.0
    %60 = vmatpush1.msra.mxu0 %v43
    %61 = vmatprep.subr.mxu0 0.0
    %62 = vmatpush1.msra.mxu0 %v44
    %63 = vmatprep.subr.mxu0 0.0
    %64 = vmatpush1.msra.mxu0 %v45
    %65 = vmatprep.subr.mxu0 0.0
    %66 = vmatpush1.msra.mxu0 0.0
    %67 = vmatprep.subr.mxu0 0.0
    %68 = vmatpush1.msra.mxu0 0.0
    %69 = vmatprep.subr.mxu0 0.0
    %70 = vmatpush1.msra.mxu0 0.0
    %71 = vmatprep.subr.mxu0 0.0
    %72 = vmatpush1.msra.mxu0 0.0
    %73 = vmatprep.subr.mxu0 0.0
    %74 = vmatpush1.msra.mxu0 0.0
    %75 = vmatprep.subr.mxu0 0.0
    %76 = vmatpush1.msra.mxu0 0.0
    %77 = vmatprep.subr.mxu0 0.0
    %78 = vmatpush1.msra.mxu0 0.0
    %79 = vmatprep.subr.mxu0 0.0
    %80 = vmatpush1.msra.mxu0 0.0
    %81 = vmatprep.subr.mxu0 0.0
    %82 = vmatpush1.msra.mxu0 0.0
    %83 = vmatprep.subr.mxu0 0.0
    %84 = vmatpush1.msra.mxu0 0.0
    %85 = vmatprep.subr.mxu0 0.0
    %86 = vmatpush1.msra.mxu0 0.0
    %87 = vmatprep.subr.mxu0 0.0
    %88 = vmatpush1.msra.mxu0 0.0
    %89 = vmatprep.subr.mxu0 0.0
    %90 = vmatpush1.msra.mxu0 0.0
    %91 = vmatprep.subr.mxu0 0.0
    %92 = vmatpush1.msra.mxu0 0.0
    %93 = vmatprep.subr.mxu0 0.0
    %94 = vmatpush1.msra.mxu0 0.0
    %95 = vmatprep.subr.mxu0 0.0
    %96 = vmatpush1.msra.mxu0 0.0
    %97 = vmatprep.subr.mxu0 0.0
    %98 = vmatpush1.msra.mxu0 0.0
    %99 = vmatprep.subr.mxu0 0.0
    %100 = vmatpush1.msra.mxu0 0.0
    %101 = vmatprep.subr.mxu0 0.0
    %102 = vmatpush1.msra.mxu0 0.0
    %103 = vmatprep.subr.mxu0 0.0
    %104 = vmatpush1.msra.mxu0 0.0
    %105 = vmatprep.subr.mxu0 0.0
    %106 = vmatpush1.msra.mxu0 0.0
    %107 = vmatprep.subr.mxu0 0.0
    %108 = vmatpush1.msra.mxu0 0.0
    %109 = vmatprep.subr.mxu0 0.0
    %110 = vmatpush1.msra.mxu0 0.0
    %111 = vmatprep.subr.mxu0 0.0
    %112 = vmatpush1.msra.mxu0 0.0
    %113 = vmatprep.subr.mxu0 0.0
    %114 = vmatpush1.msra.mxu0 0.0
    %115 = vmatprep.subr.mxu0 0.0
    %116 = vmatpush1.msra.mxu0 0.0
    %117 = vmatprep.subr.mxu0 0.0
    %118 = vmatpush1.msra.mxu0 0.0
    %119 = vmatprep.subr.mxu0 0.0
    %120 = vmatpush1.msra.mxu0 0.0
    %121 = vmatprep.mubr.f32.mxu0 0.0
    %122 = vmatmul.mubr.f32.gmra.mrb[0].mxu0 %v55
    %v123 = vpop.f32.mrb[0].mxu0
    %v124 = vadd.f32 %v51, %v123
    %v125 = vpop.f32.mrb[0].mxu0
    %126 = vdwg.mxu0
    %127 = vst.msk [vmem:[#allocation7] sm:$0xff] %vm53, %v124
    // Predicated region
    $region22: #{tpu_custom_call.1} parent=1 // pred_check
      _
    $region23: #{tpu_custom_call.1} parent=1 // pred_check_branch
      %129 = sbr.rel (0) target = $region25
    $region24: #{tpu_custom_call.1} parent=1 // pred_region
      %s131 = ssub.s32 128, 128
      %132 = vsyncadd [#allocation4], %s131
      %s134 = sshll.u32 [#allocation7], 4
      %s135 = int_to_ptr.vmem [resolvable:$true] %s134
      %137 = dma.vmem_to_hbm [thread:$0]  %s135, 128, %s3, [#allocation4]
    $region25: #{tpu_custom_call.1} parent=1 // pred_fallthru
      _
    // Predicated region
    $region26: #{tpu_custom_call.1} parent=1 // pred_check
      _
    $region27: #{tpu_custom_call.1} parent=1 // pred_check_branch
      %139 = sbr.rel (0) target = $region29
    $region28: #{tpu_custom_call.1} parent=1 // pred_region
      %140 = dma.done [#allocation4], 128
    $region29: #{tpu_custom_call.1} parent=1 // pred_fallthru
      _
    %141 = vsyncpa [#allocation3], 1
    %142 = vsyncpa [#allocation6], 1
    %143 = vsyncpa [#allocation4], 1

</llo_original>
